<compile_context>
chip_gen: v6e
topology: v6e:2x2x1
jax: 0.10.0
libtpu: 0.0.40
codegen_flags: <defaults>
</compile_context>

<pallas_src>
import functools

import jax
import jax.numpy as jnp
from jax.experimental import pallas as pl
from jax.experimental.pallas import tpu as pltpu


# ----------------------------------------------------------------------------
# helpers / one-time feature + hardware detection
# ----------------------------------------------------------------------------
def _round_up(x, m):
    return ((x + m - 1) // m) * m


def _detect_buffered():
    """Detect once whether this JAX build supports BlockSpec(pipeline_mode=...)."""
    if not hasattr(pl, "Buffered"):
        return False
    try:
        pl.BlockSpec((8, 128), lambda i: (0, 0), pipeline_mode=pl.Buffered(1))
        return True
    except Exception:
        return False


_HAS_BUFFERED = _detect_buffered()


def _tpu_hw_info():
    """Return (physical VMEM bytes, multi-TensorCore chip?) with safe defaults."""
    vmem_bytes = 128 * 1024 * 1024  # v5e / v6e default
    try:
        vmem_bytes = int(pltpu.get_tpu_info().vmem_capacity_bytes)
    except Exception:
        pass
    # v7x-class parts: 64 MiB VMEM per TC and 2 TensorCores per chip.
    multi_tc = vmem_bytes <= 64 * 1024 * 1024
    try:
        kind = jax.devices()[0].device_kind.lower()
        if "v7" in kind:
            multi_tc = True
    except Exception:
        pass
    return vmem_bytes, multi_tc


_VMEM_BYTES, _MULTI_TC = _tpu_hw_info()
# ~20% headroom under physical VMEM: ~100 MiB on v5e/v6e, ~52 MiB on v7x.
_VMEM_LIMIT = int(_VMEM_BYTES * 0.8)


# ----------------------------------------------------------------------------
# kernel
# ----------------------------------------------------------------------------
def mlp_generator_kernel(x_ref,
                         w1_ref, b1_ref,
                         w2_ref, b2_ref,
                         w3_ref, b3_ref,
                         w4_ref, b4_ref,
                         o_ref):
    cdt = w1_ref.dtype  # MXU operand dtype (bf16 by default, f32 optional)

    # Cast x inside the kernel: lets the wrapper pass unpadded f32 x directly.
    x = x_ref[...].astype(cdt)

    # All dots accumulate in f32 on the MXU; bias-add / ReLU stay f32 (v5e VPU).
    h = jnp.dot(x, w1_ref[...], preferred_element_type=jnp.float32) + b1_ref[...]
    h = jnp.maximum(h, 0.0)
    h = jnp.dot(h.astype(cdt), w2_ref[...], preferred_element_type=jnp.float32) + b2_ref[...]
    h = jnp.maximum(h, 0.0)
    h = jnp.dot(h.astype(cdt), w3_ref[...], preferred_element_type=jnp.float32) + b3_ref[...]
    h = jnp.maximum(h, 0.0)
    h = jnp.dot(h.astype(cdt), w4_ref[...], preferred_element_type=jnp.float32) + b4_ref[...]
    o_ref[...] = h.astype(o_ref.dtype)


# ----------------------------------------------------------------------------
# tiling
# ----------------------------------------------------------------------------
def _select_tiling(N, tm, multi_tc):
    """Rebalanced row tiling: minimal padding, even step count on 2-TC chips."""
    n8 = _round_up(max(N, 1), 8)
    tm_cap = max(8, _round_up(min(tm, n8), 8))
    g = pl.cdiv(n8, tm_cap)
    if multi_tc and n8 >= 16:
        g = max(g, 2)
        if g % 2:
            g += 1
    tm_eff = _round_up(pl.cdiv(n8, g), 8)
    n_pad = g * tm_eff
    return tm_eff, n_pad, g


# ----------------------------------------------------------------------------
# forward builder (pads / casts weights ONCE, returns a jitted forward)
# ----------------------------------------------------------------------------
def make_mlp_generator(params, *, compute_dtype=jnp.bfloat16,
                       out_dtype=jnp.float32, tm=512):
    """params: dict of w1..w4 (in,out layout) and b1..b4 ((1,out) or (out,))."""
    input_dim, output_dim = params["w1"].shape
    in_p = _round_up(input_dim, 128)
    out_p = _round_up(output_dim, 128)

    def pad2(a, rows, cols, dtype):
        a = jnp.asarray(a)
        if a.ndim == 1:
            a = a.reshape(1, -1)
        return jnp.pad(a, ((0, rows - a.shape[0]), (0, cols - a.shape[1]))).astype(dtype)

    # Weight prep happens exactly once (outside the per-call path).
    w1 = pad2(params["w1"], in_p, out_p, compute_dtype)
    w2 = pad2(params["w2"], out_p, out_p, compute_dtype)
    w3 = pad2(params["w3"], out_p, out_p, compute_dtype)
    w4 = pad2(params["w4"], out_p, out_p, compute_dtype)
    b1 = pad2(params["b1"], 1, out_p, jnp.float32)
    b2 = pad2(params["b2"], 1, out_p, jnp.float32)
    b3 = pad2(params["b3"], 1, out_p, jnp.float32)
    b4 = pad2(params["b4"], 1, out_p, jnp.float32)

    w_bytes = jnp.dtype(compute_dtype).itemsize
    buf_factor = 1 if _HAS_BUFFERED else 2
    resident_bytes = buf_factor * ((in_p * out_p + 3 * out_p * out_p) * w_bytes
                                   + 4 * out_p * 4)
    fits_resident = resident_bytes <= int(0.7 * _VMEM_LIMIT)

    # Cap the row tile so streaming x/out buffers (+ f32 hidden working set)
    # stay comfortably inside the remaining VMEM.
    avail = max(_VMEM_LIMIT - resident_bytes, 2 * 1024 * 1024)
    per_row = 2 * (in_p * w_bytes + out_p * jnp.dtype(out_dtype).itemsize) + 2 * out_p * 4
    tm_vmem_cap = max(8, ((avail // per_row) // 8) * 8)
    tm_base = min(tm, tm_vmem_cap)

    def _wspec(shape):
        if _HAS_BUFFERED:
            return pl.BlockSpec(shape, lambda i: (0, 0), pipeline_mode=pl.Buffered(1))
        return pl.BlockSpec(shape, lambda i: (0, 0))

    @jax.jit
    def forward(x):
        N = x.shape[0]
        assert x.shape[1] == input_dim

        if not fits_resident:
            # TODO(synk): large-output_dim path — tile the output columns of the
            # last layer / pipeline w2..w4 over K instead of this jnp fallback.
            h = jax.nn.relu(x @ params["w1"].astype(x.dtype) + params["b1"].reshape(1, -1))
            h = jax.nn.relu(h @ params["w2"].astype(x.dtype) + params["b2"].reshape(1, -1))
            h = jax.nn.relu(h @ params["w3"].astype(x.dtype) + params["b3"].reshape(1, -1))
            h = h @ params["w4"].astype(x.dtype) + params["b4"].reshape(1, -1)
            return h.astype(out_dtype)

        tm_eff, n_pad, g = _select_tiling(N, tm_base, _MULTI_TC)

        # Pass x as-is (cast happens in-kernel) when already aligned; otherwise
        # pad + cast to the compute dtype inside this jitted function (fused).
        if n_pad == N and in_p == input_dim:
            x_p = x
        else:
            x_p = jnp.pad(x, ((0, n_pad - N), (0, in_p - input_dim))).astype(compute_dtype)

        in_specs = [
            pl.BlockSpec((tm_eff, in_p), lambda i: (i, 0)),   # streaming x row tile
            _wspec((in_p, out_p)), _wspec((1, out_p)),
            _wspec((out_p, out_p)), _wspec((1, out_p)),
            _wspec((out_p, out_p)), _wspec((1, out_p)),
            _wspec((out_p, out_p)), _wspec((1, out_p)),
        ]
        out_spec = pl.BlockSpec((tm_eff, out_p), lambda i: (i, 0))

        out_padded = pl.pallas_call(
            mlp_generator_kernel,
            out_shape=jax.ShapeDtypeStruct((n_pad, out_p), out_dtype),
            grid=(g,),
            in_specs=in_specs,
            out_specs=out_spec,
            compiler_params=pltpu.CompilerParams(
                dimension_semantics=("parallel",),
                vmem_limit_bytes=_VMEM_LIMIT),
        )(x_p, w1, b1, w2, b2, w3, b3, w4, b4)

        # Static slice; fused under jit (no separate HBM->HBM copy pass).
        return out_padded[:N, :output_dim]

    return forward


def mlp_generator_forward(x, params, **kwargs):
    """One-shot convenience wrapper (prefer make_mlp_generator for repeated calls)."""
    return make_mlp_generator(params, **kwargs)(x)


# ----------------------------------------------------------------------------
# reference / init (nn.Linear semantics: y = x @ W^T + b; we store W transposed)
# ----------------------------------------------------------------------------
def init_params(key, input_dim, output_dim):
    ks = jax.random.split(key, 8)

    def lin(kw, kb, fan_in, fan_out):
        bound = 1.0 / jnp.sqrt(fan_in)
        w = jax.random.uniform(kw, (fan_in, fan_out), jnp.float32, -bound, bound)
        b = jax.random.uniform(kb, (1, fan_out), jnp.float32, -bound, bound)
        return w, b

    w1, b1 = lin(ks[0], ks[1], input_dim, output_dim)
    w2, b2 = lin(ks[2], ks[3], output_dim, output_dim)
    w3, b3 = lin(ks[4], ks[5], output_dim, output_dim)
    w4, b4 = lin(ks[6], ks[7], output_dim, output_dim)
    return {"w1": w1, "b1": b1, "w2": w2, "b2": b2,
            "w3": w3, "b3": b3, "w4": w4, "b4": b4}


def mlp_generator_ref(x, p):
    h = jax.nn.relu(x @ p["w1"] + p["b1"])
    h = jax.nn.relu(h @ p["w2"] + p["b2"])
    h = jax.nn.relu(h @ p["w3"] + p["b3"])
    return h @ p["w4"] + p["b4"]


if __name__ == "__main__":
    # Small shapes consistent with the module; N not a multiple of the tile and
    # input/output dims not multiples of 128 to exercise the padding paths.
    N, input_dim, output_dim = 12, 32, 64
    key = jax.random.PRNGKey(0)
    k_x, k_p = jax.random.split(key)

    x = jax.random.normal(k_x, (N, input_dim), jnp.float32)
    params = init_params(k_p, input_dim, output_dim)

    forward = make_mlp_generator(params)
    out = jax.block_until_ready(forward(x))

    ref = mlp_generator_ref(x, params)
    assert out.shape == (N, output_dim)
    # bf16 MXU operands with f32 accumulation vs. pure-f32 reference.
    assert jnp.allclose(out, ref, atol=3e-2, rtol=3e-2), "mismatch vs reference"

    print("KERNEL_OK")
</pallas_src>

<mosaic_0001>
module attributes {stable_mosaic.version = 11 : i64} {
  func.func @mlp_generator_kernel(%arg0: i32, %arg1: memref<16x128xbf16, #tpu.memory_space<vmem>>, %arg2: memref<128x128xbf16, #tpu.memory_space<vmem>>, %arg3: memref<1x128xf32, #tpu.memory_space<vmem>>, %arg4: memref<128x128xbf16, #tpu.memory_space<vmem>>, %arg5: memref<1x128xf32, #tpu.memory_space<vmem>>, %arg6: memref<128x128xbf16, #tpu.memory_space<vmem>>, %arg7: memref<1x128xf32, #tpu.memory_space<vmem>>, %arg8: memref<128x128xbf16, #tpu.memory_space<vmem>>, %arg9: memref<1x128xf32, #tpu.memory_space<vmem>>, %arg10: memref<16x128xf32, #tpu.memory_space<vmem>>) attributes {dimension_semantics = [#tpu.dimension_semantics<parallel>], iteration_bounds = array<i64: 1>, scalar_prefetch = 0 : i64, scratch_operands = 0 : i64, tpu.core_type = #tpu.core_type<tc>, window_params = [{transform_indices = @transform_0, window_bounds = array<i64: 16, 128>}, {pipeline_mode = #tpu.pipeline_mode<synchronous>, transform_indices = @transform_1, window_bounds = array<i64: 128, 128>}, {pipeline_mode = #tpu.pipeline_mode<synchronous>, transform_indices = @transform_2, window_bounds = array<i64: 1, 128>}, {pipeline_mode = #tpu.pipeline_mode<synchronous>, transform_indices = @transform_3, window_bounds = array<i64: 128, 128>}, {pipeline_mode = #tpu.pipeline_mode<synchronous>, transform_indices = @transform_4, window_bounds = array<i64: 1, 128>}, {pipeline_mode = #tpu.pipeline_mode<synchronous>, transform_indices = @transform_5, window_bounds = array<i64: 128, 128>}, {pipeline_mode = #tpu.pipeline_mode<synchronous>, transform_indices = @transform_6, window_bounds = array<i64: 1, 128>}, {pipeline_mode = #tpu.pipeline_mode<synchronous>, transform_indices = @transform_7, window_bounds = array<i64: 128, 128>}, {pipeline_mode = #tpu.pipeline_mode<synchronous>, transform_indices = @transform_8, window_bounds = array<i64: 1, 128>}, {transform_indices = @transform_9, window_bounds = array<i64: 16, 128>}]} {
    %c0 = arith.constant 0 : index
    %c0_0 = arith.constant 0 : index
    %0 = vector.load %arg1[%c0, %c0_0] : memref<16x128xbf16, #tpu.memory_space<vmem>>, vector<16x128xbf16>
    %c0_1 = arith.constant 0 : index
    %c0_2 = arith.constant 0 : index
    %1 = vector.load %arg2[%c0_1, %c0_2] : memref<128x128xbf16, #tpu.memory_space<vmem>>, vector<128x128xbf16>
    %cst = arith.constant dense<0.000000e+00> : vector<16x128xf32>
    %2 = tpu.matmul %0, %1, %cst {dimension_numbers = #tpu.dot_dimension_numbers<[1], [0], [0], [1], [0, 0, 1, 1], [], []>} : vector<16x128xbf16>, vector<128x128xbf16>, vector<16x128xf32> -> vector<16x128xf32>
    %c0_3 = arith.constant 0 : index
    %c0_4 = arith.constant 0 : index
    %3 = vector.load %arg3[%c0_3, %c0_4] : memref<1x128xf32, #tpu.memory_space<vmem>>, vector<1x128xf32>
    %4 = vector.broadcast %3 : vector<1x128xf32> to vector<16x128xf32>
    %5 = arith.addf %2, %4 : vector<16x128xf32>
    %cst_5 = arith.constant 0.000000e+00 : f32
    %6 = vector.broadcast %cst_5 : f32 to vector<16x128xf32>
    %7 = arith.maximumf %5, %6 : vector<16x128xf32>
    %8 = arith.truncf %7 : vector<16x128xf32> to vector<16x128xbf16>
    %c0_6 = arith.constant 0 : index
    %c0_7 = arith.constant 0 : index
    %9 = vector.load %arg4[%c0_6, %c0_7] : memref<128x128xbf16, #tpu.memory_space<vmem>>, vector<128x128xbf16>
    %cst_8 = arith.constant dense<0.000000e+00> : vector<16x128xf32>
    %10 = tpu.matmul %8, %9, %cst_8 {dimension_numbers = #tpu.dot_dimension_numbers<[1], [0], [0], [1], [0, 0, 1, 1], [], []>} : vector<16x128xbf16>, vector<128x128xbf16>, vector<16x128xf32> -> vector<16x128xf32>
    %c0_9 = arith.constant 0 : index
    %c0_10 = arith.constant 0 : index
    %11 = vector.load %arg5[%c0_9, %c0_10] : memref<1x128xf32, #tpu.memory_space<vmem>>, vector<1x128xf32>
    %12 = vector.broadcast %11 : vector<1x128xf32> to vector<16x128xf32>
    %13 = arith.addf %10, %12 : vector<16x128xf32>
    %cst_11 = arith.constant 0.000000e+00 : f32
    %14 = vector.broadcast %cst_11 : f32 to vector<16x128xf32>
    %15 = arith.maximumf %13, %14 : vector<16x128xf32>
    %16 = arith.truncf %15 : vector<16x128xf32> to vector<16x128xbf16>
    %c0_12 = arith.constant 0 : index
    %c0_13 = arith.constant 0 : index
    %17 = vector.load %arg6[%c0_12, %c0_13] : memref<128x128xbf16, #tpu.memory_space<vmem>>, vector<128x128xbf16>
    %cst_14 = arith.constant dense<0.000000e+00> : vector<16x128xf32>
    %18 = tpu.matmul %16, %17, %cst_14 {dimension_numbers = #tpu.dot_dimension_numbers<[1], [0], [0], [1], [0, 0, 1, 1], [], []>} : vector<16x128xbf16>, vector<128x128xbf16>, vector<16x128xf32> -> vector<16x128xf32>
    %c0_15 = arith.constant 0 : index
    %c0_16 = arith.constant 0 : index
    %19 = vector.load %arg7[%c0_15, %c0_16] : memref<1x128xf32, #tpu.memory_space<vmem>>, vector<1x128xf32>
    %20 = vector.broadcast %19 : vector<1x128xf32> to vector<16x128xf32>
    %21 = arith.addf %18, %20 : vector<16x128xf32>
    %cst_17 = arith.constant 0.000000e+00 : f32
    %22 = vector.broadcast %cst_17 : f32 to vector<16x128xf32>
    %23 = arith.maximumf %21, %22 : vector<16x128xf32>
    %24 = arith.truncf %23 : vector<16x128xf32> to vector<16x128xbf16>
    %c0_18 = arith.constant 0 : index
    %c0_19 = arith.constant 0 : index
    %25 = vector.load %arg8[%c0_18, %c0_19] : memref<128x128xbf16, #tpu.memory_space<vmem>>, vector<128x128xbf16>
    %cst_20 = arith.constant dense<0.000000e+00> : vector<16x128xf32>
    %26 = tpu.matmul %24, %25, %cst_20 {dimension_numbers = #tpu.dot_dimension_numbers<[1], [0], [0], [1], [0, 0, 1, 1], [], []>} : vector<16x128xbf16>, vector<128x128xbf16>, vector<16x128xf32> -> vector<16x128xf32>
    %c0_21 = arith.constant 0 : index
    %c0_22 = arith.constant 0 : index
    %27 = vector.load %arg9[%c0_21, %c0_22] : memref<1x128xf32, #tpu.memory_space<vmem>>, vector<1x128xf32>
    %28 = vector.broadcast %27 : vector<1x128xf32> to vector<16x128xf32>
    %29 = arith.addf %26, %28 : vector<16x128xf32>
    %c0_23 = arith.constant 0 : index
    %c0_24 = arith.constant 0 : index
    %30 = vector.load %arg10[%c0_23, %c0_24] : memref<16x128xf32, #tpu.memory_space<vmem>>, vector<16x128xf32>
    tpu.vector_store %arg10[%c0_23, %c0_24], %29 {strides = array<i32>} : memref<16x128xf32, #tpu.memory_space<vmem>>, vector<16x128xf32>,
    return
  }
  func.func @transform_0(%arg0: i32) -> (i32, i32) {
    %c0_i32 = arith.constant 0 : i32
    %c0_i32_0 = arith.constant 0 : i32
    return %arg0, %c0_i32 : i32, i32
  }
  func.func @transform_1(%arg0: i32) -> (i32, i32) {
    %c0_i32 = arith.constant 0 : i32
    %c0_i32_0 = arith.constant 0 : i32
    %c0_i32_1 = arith.constant 0 : i32
    return %c0_i32, %c0_i32_0 : i32, i32
  }
  func.func @transform_2(%arg0: i32) -> (i32, i32) {
    %c0_i32 = arith.constant 0 : i32
    %c0_i32_0 = arith.constant 0 : i32
    %c0_i32_1 = arith.constant 0 : i32
    return %c0_i32, %c0_i32_0 : i32, i32
  }
  func.func @transform_3(%arg0: i32) -> (i32, i32) {
    %c0_i32 = arith.constant 0 : i32
    %c0_i32_0 = arith.constant 0 : i32
    %c0_i32_1 = arith.constant 0 : i32
    return %c0_i32, %c0_i32_0 : i32, i32
  }
  func.func @transform_4(%arg0: i32) -> (i32, i32) {
    %c0_i32 = arith.constant 0 : i32
    %c0_i32_0 = arith.constant 0 : i32
    %c0_i32_1 = arith.constant 0 : i32
    return %c0_i32, %c0_i32_0 : i32, i32
  }
  func.func @transform_5(%arg0: i32) -> (i32, i32) {
    %c0_i32 = arith.constant 0 : i32
    %c0_i32_0 = arith.constant 0 : i32
    %c0_i32_1 = arith.constant 0 : i32
    return %c0_i32, %c0_i32_0 : i32, i32
  }
  func.func @transform_6(%arg0: i32) -> (i32, i32) {
    %c0_i32 = arith.constant 0 : i32
    %c0_i32_0 = arith.constant 0 : i32
    %c0_i32_1 = arith.constant 0 : i32
    return %c0_i32, %c0_i32_0 : i32, i32
  }
  func.func @transform_7(%arg0: i32) -> (i32, i32) {
    %c0_i32 = arith.constant 0 : i32
    %c0_i32_0 = arith.constant 0 : i32
    %c0_i32_1 = arith.constant 0 : i32
    return %c0_i32, %c0_i32_0 : i32, i32
  }
  func.func @transform_8(%arg0: i32) -> (i32, i32) {
    %c0_i32 = arith.constant 0 : i32
    %c0_i32_0 = arith.constant 0 : i32
    %c0_i32_1 = arith.constant 0 : i32
    return %c0_i32, %c0_i32_0 : i32, i32
  }
  func.func @transform_9(%arg0: i32) -> (i32, i32) {
    %c0_i32 = arith.constant 0 : i32
    %c0_i32_0 = arith.constant 0 : i32
    return %arg0, %c0_i32 : i32, i32
  }
}

</mosaic_0001>

<llo_original>
// kernel: forward.1
$region0: #{forward.1}
  #allocation0 [shape = 'u32[]', space=smem, size = 0x4, offset = 0x4, fixed_abs, tag = 'smem constant byte address 0x4 - core index']
  #allocation1 [shape = 'u32[144,128]{1,0:T(1,128)}', space=vmem, size = 0x12000, scoped, tag = 'internal scratch']
  %s0 = inlined_call_operand.vmem [shape: bf16[16,128], index: 0, kind: input, shape index: {}]
  %s1 = inlined_call_operand.hbm [shape: bf16[128,128], index: 1, kind: input, shape index: {}]
  %s2 = inlined_call_operand.vmem [shape: f32[1,128], index: 2, kind: input, shape index: {}]
  %s3 = inlined_call_operand.hbm [shape: bf16[128,128], index: 3, kind: input, shape index: {}]
  %s4 = inlined_call_operand.vmem [shape: f32[1,128], index: 4, kind: input, shape index: {}]
  %s5 = inlined_call_operand.hbm [shape: bf16[128,128], index: 5, kind: input, shape index: {}]
  %s6 = inlined_call_operand.vmem [shape: f32[1,128], index: 6, kind: input, shape index: {}]
  %s7 = inlined_call_operand.hbm [shape: bf16[128,128], index: 7, kind: input, shape index: {}]
  %s8 = inlined_call_operand.vmem [shape: f32[1,128], index: 8, kind: input, shape index: {}]
  %s9 = inlined_call_operand.hbm [shape: f32[16,128], index: 9, kind: output, shape index: {}]
  %s10 = sld [smem:[#allocation0]]
  $region62: #{forward.1} parent=0
    _
  %s12 = ssub.s32 1, %s10
  %s13 = scalar_select 0, %s12, %s10
  $region1: #{forward.1} parent=0
    #allocation2 [shape = 'u8[32768]{0}', space=vmem, size = 0x8000, scoped, tag = 'input window, operand 1, single buffered']
    #allocation3 [shape = 's32[1]{0}', space=sflag, size = 0x4, scoped, tag = 'scoped memory for forward.1']
    #allocation4 [shape = 's32[1]{0}', space=sflag, size = 0x4, scoped, tag = 'scoped memory for forward.1']
    #allocation5 [shape = 'u8[32768]{0}', space=vmem, size = 0x8000, scoped, tag = 'input window, operand 3, single buffered']
    #allocation6 [shape = 's32[1]{0}', space=sflag, size = 0x4, scoped, tag = 'scoped memory for forward.1']
    #allocation7 [shape = 'u8[32768]{0}', space=vmem, size = 0x8000, scoped, tag = 'input window, operand 5, single buffered']
    #allocation8 [shape = 'u8[32768]{0}', space=vmem, size = 0x8000, scoped, tag = 'input window, operand 7, single buffered']
    #allocation9 [shape = 's32[1]{0}', space=sflag, size = 0x4, scoped, tag = 'scoped memory for forward.1']
    #allocation10 [shape = 'u8[8192]{0}', space=vmem, size = 0x2000, scoped, tag = 'output window, operand 0, single buffered']
    %14 = vsyncpa [#allocation3], 0
    %15 = vsyncpa [#allocation6], 0
    %16 = vsyncpa [#allocation9], 0
    %17 = vsyncpa [#allocation4], 0
    // Predicated region
    $region2: #{forward.1} parent=1 // pred_check
      _
    $region3: #{forward.1} parent=1 // pred_check_branch
      %19 = sbr.rel (0) target = $region5
    $region4: #{forward.1} parent=1 // pred_region
      _
    $region5: #{forward.1} parent=1 // pred_fallthru
      _
    // Predicated region
    $region6: #{forward.1} parent=1 // pred_check
      _
    $region7: #{forward.1} parent=1 // pred_check_branch
      %21 = sbr.rel (0) target = $region9
    $region8: #{forward.1} parent=1 // pred_region
      %s23 = ssub.s32 1024, 1024
      %24 = vsyncadd [#allocation3], %s23
      %s25 = sshll.u32 [#allocation2], 4
      %s26 = int_to_ptr.vmem [resolvable:$true] %s25
      %31 = dma.hbm_to_vmem [thread:$0]  %s1, 1024, %s26, [#allocation3], 64, 64, 4
    $region9: #{forward.1} parent=1 // pred_fallthru
      _
    // Predicated region
    $region10: #{forward.1} parent=1 // pred_check
      _
    $region11: #{forward.1} parent=1 // pred_check_branch
      %33 = sbr.rel (0) target = $region13
    $region12: #{forward.1} parent=1 // pred_region
      _
    $region13: #{forward.1} parent=1 // pred_fallthru
      _
    // Predicated region
    $region14: #{forward.1} parent=1 // pred_check
      _
    $region15: #{forward.1} parent=1 // pred_check_branch
      %35 = sbr.rel (0) target = $region17
    $region16: #{forward.1} parent=1 // pred_region
      %s37 = ssub.s32 1024, 1024
      %38 = vsyncadd [#allocation6], %s37
      %s39 = sshll.u32 [#allocation5], 4
      %s40 = int_to_ptr.vmem [resolvable:$true] %s39
      %45 = dma.hbm_to_vmem [thread:$0]  %s3, 1024, %s40, [#allocation6], 64, 64, 4
    $region17: #{forward.1} parent=1 // pred_fallthru
      _
    // Predicated region
    $region18: #{forward.1} parent=1 // pred_check
      _
    $region19: #{forward.1} parent=1 // pred_check_branch
      %47 = sbr.rel (0) target = $region21
    $region20: #{forward.1} parent=1 // pred_region
      _
    $region21: #{forward.1} parent=1 // pred_fallthru
      _
    // Predicated region
    $region22: #{forward.1} parent=1 // pred_check
      _
    $region23: #{forward.1} parent=1 // pred_check_branch
      %49 = sbr.rel (0) target = $region25
    $region24: #{forward.1} parent=1 // pred_region
      %s51 = ssub.s32 1024, 1024
      %52 = vsyncadd [#allocation6], %s51
      %s53 = sshll.u32 [#allocation7], 4
      %s54 = int_to_ptr.vmem [resolvable:$true] %s53
      %59 = dma.hbm_to_vmem [thread:$0]  %s5, 1024, %s54, [#allocation6], 64, 64, 4
    $region25: #{forward.1} parent=1 // pred_fallthru
      _
    // Predicated region
    $region26: #{forward.1} parent=1 // pred_check
      _
    $region27: #{forward.1} parent=1 // pred_check_branch
      %61 = sbr.rel (0) target = $region29
    $region28: #{forward.1} parent=1 // pred_region
      _
    $region29: #{forward.1} parent=1 // pred_fallthru
      _
    // Predicated region
    $region30: #{forward.1} parent=1 // pred_check
      _
    $region31: #{forward.1} parent=1 // pred_check_branch
      %63 = sbr.rel (0) target = $region33
    $region32: #{forward.1} parent=1 // pred_region
      %s65 = ssub.s32 1024, 1024
      %66 = vsyncadd [#allocation9], %s65
      %s67 = sshll.u32 [#allocation8], 4
      %s68 = int_to_ptr.vmem [resolvable:$true] %s67
      %73 = dma.hbm_to_vmem [thread:$0]  %s7, 1024, %s68, [#allocation9], 64, 64, 4
    $region33: #{forward.1} parent=1 // pred_fallthru
      _
    // Predicated region
    $region34: #{forward.1} parent=1 // pred_check
      _
    $region35: #{forward.1} parent=1 // pred_check_branch
      %75 = sbr.rel (0) target = $region37
    $region36: #{forward.1} parent=1 // pred_region
      _
    $region37: #{forward.1} parent=1 // pred_fallthru
      _
    // Predicated region
    $region38: #{forward.1} parent=1 // pred_check
      _
    $region39: #{forward.1} parent=1 // pred_check_branch
      %77 = sbr.rel (0) target = $region41
    $region40: #{forward.1} parent=1 // pred_region
      %78 = dma.done [#allocation3], 1024
    $region41: #{forward.1} parent=1 // pred_fallthru
      _
    // Predicated region
    $region42: #{forward.1} parent=1 // pred_check
      _
    $region43: #{forward.1} parent=1 // pred_check_branch
      %80 = sbr.rel (0) target = $region45
    $region44: #{forward.1} parent=1 // pred_region
      %81 = dma.done [#allocation6], 1024
    $region45: #{forward.1} parent=1 // pred_fallthru
      _
    // Predicated region
    $region46: #{forward.1} parent=1 // pred_check
      _
    $region47: #{forward.1} parent=1 // pred_check_branch
      %83 = sbr.rel (0) target = $region49
    $region48: #{forward.1} parent=1 // pred_region
      %84 = dma.done [#allocation6], 1024
    $region49: #{forward.1} parent=1 // pred_fallthru
      _
    // Predicated region
    $region50: #{forward.1} parent=1 // pred_check
      _
    $region51: #{forward.1} parent=1 // pred_check_branch
      %86 = sbr.rel (0) target = $region53
    $region52: #{forward.1} parent=1 // pred_region
      %87 = dma.done [#allocation9], 1024
    $region53: #{forward.1} parent=1 // pred_fallthru
      _
    %v89 = vld [vmem:[%s0] sm:$0xf]
    %v90 = vld [vmem:[%s0 + $0x4] sm:$0xf]
    %v91 = vld [vmem:[#allocation2] sm:$0xf]
    %v92 = vld [vmem:[#allocation2 + $0x4] sm:$0xf]
    %v93 = vld [vmem:[#allocation2 + $0x8] sm:$0xf]
    %v94 = vld [vmem:[#allocation2 + $0xc] sm:$0xf]
    %v95 = vld [vmem:[#allocation2 + $0x10] sm:$0xf]
    %v96 = vld [vmem:[#allocation2 + $0x14] sm:$0xf]
    %v97 = vld [vmem:[#allocation2 + $0x18] sm:$0xf]
    %v98 = vld [vmem:[#allocation2 + $0x1c] sm:$0xf]
    %v99 = vld [vmem:[#allocation2 + $0x20] sm:$0xf]
    %v100 = vld [vmem:[#allocation2 + $0x24] sm:$0xf]
    %v101 = vld [vmem:[#allocation2 + $0x28] sm:$0xf]
    %v102 = vld [vmem:[#allocation2 + $0x2c] sm:$0xf]
    %v103 = vld [vmem:[#allocation2 + $0x30] sm:$0xf]
    %v104 = vld [vmem:[#allocation2 + $0x34] sm:$0xf]
    %v105 = vld [vmem:[#allocation2 + $0x38] sm:$0xf]
    %v106 = vld [vmem:[#allocation2 + $0x3c] sm:$0xf]
    %v107 = vld [vmem:[%s2] sm:$0x1]
    %v109 = vlaneseq
    %v110 = vshrl.u32 %v109, 7
    %v111 = vsub.s32 0, %v110
    %v112 = vrot.slane %v107, %v111
    %v116 = vunpack.c.l.b16 %v89
    %v117 = vunpack.c.l.b16 %v90
    %v118 = vpack.c.b16 %v117, %v116
    %v136 = vunpack.c.l.b16 %v91
    %v137 = vunpack.c.l.b16 %v92
    %v138 = vunpack.c.l.b16 %v93
    %v139 = vunpack.c.l.b16 %v94
    %v140 = vunpack.c.l.b16 %v95
    %v141 = vunpack.c.l.b16 %v96
    %v142 = vunpack.c.l.b16 %v97
    %v143 = vunpack.c.l.b16 %v98
    %v144 = vunpack.c.l.b16 %v99
    %v145 = vunpack.c.l.b16 %v100
    %v146 = vunpack.c.l.b16 %v101
    %v147 = vunpack.c.l.b16 %v102
    %v148 = vunpack.c.l.b16 %v103
    %v149 = vunpack.c.l.b16 %v104
    %v150 = vunpack.c.l.b16 %v105
    %v151 = vunpack.c.l.b16 %v106
    %v152 = vpack.c.b16 %v137, %v136
    %v153 = vpack.c.b16 %v139, %v138
    %v154 = vpack.c.b16 %v141, %v140
    %v155 = vpack.c.b16 %v143, %v142
    %v156 = vpack.c.b16 %v145, %v144
    %v157 = vpack.c.b16 %v147, %v146
    %v158 = vpack.c.b16 %v149, %v148
    %v159 = vpack.c.b16 %v151, %v150
    %168 = vmatprep.subr.bf16.mxu0 0
    %169 = vmatpush1.bf16.msra.mxu0 %v159
    %170 = vmatprep.subr.bf16.mxu0 0
    %171 = vmatpush1.bf16.msra.mxu0 %v158
    %172 = vmatprep.subr.bf16.mxu0 0
    %173 = vmatpush1.bf16.msra.mxu0 %v157
    %174 = vmatprep.subr.bf16.mxu0 0
    %175 = vmatpush1.bf16.msra.mxu0 %v156
    %176 = vmatprep.subr.bf16.mxu0 0
    %177 = vmatpush1.bf16.msra.mxu0 %v155
    %178 = vmatprep.subr.bf16.mxu0 0
    %179 = vmatpush1.bf16.msra.mxu0 %v154
    %180 = vmatprep.subr.bf16.mxu0 0
    %181 = vmatpush1.bf16.msra.mxu0 %v153
    %182 = vmatprep.subr.bf16.mxu0 0
    %183 = vmatpush1.bf16.msra.mxu0 %v152
    %184 = vmatprep.subr.bf16.mxu0 0
    %185 = vmatpush2.bf16.msra.mxu0 0
    %186 = vmatprep.subr.bf16.mxu0 0
    %187 = vmatpush2.bf16.msra.mxu0 0
    %188 = vmatprep.subr.bf16.mxu0 0
    %189 = vmatpush2.bf16.msra.mxu0 0
    %190 = vmatprep.subr.bf16.mxu0 0
    %191 = vmatpush2.bf16.msra.mxu0 0
    %192 = vmatprep.subr.bf16.mxu0 0
    %193 = vmatpush2.bf16.msra.mxu0 0
    %194 = vmatprep.subr.bf16.mxu0 0
    %195 = vmatpush2.bf16.msra.mxu0 0
    %196 = vmatprep.subr.bf16.mxu0 0
    %197 = vmatpush2.bf16.msra.mxu0 0
    %198 = vmatprep.subr.bf16.mxu0 0
    %199 = vmatpush2.bf16.msra.mxu0 0
    %200 = vmatprep.mubr.bf16.mxu0 0
    %201 = vmatmul.mubr.bf16.gmra.mxu0 %v118
    %v202 = vpop.f32.mrf.mxu0
    %v203 = vadd.f32 %v112, %v202
    %v204 = vpop.f32.mrf.mxu0
    %v205 = vpop.f32.mrf.mxu0
    %v206 = vadd.f32 %v112, %v205
    %v207 = vpop.f32.mrf.mxu0
    %208 = vdwg.mxu0
    %v209 = vmax.f32 %v203, 0.0
    %v210 = vmax.f32 %v206, 0.0
    %v211 = vpack.c.bf16 %v210, %v209
    %v212 = vld [vmem:[#allocation5] sm:$0xf]
    %v213 = vld [vmem:[#allocation5 + $0x4] sm:$0xf]
    %v214 = vld [vmem:[#allocation5 + $0x8] sm:$0xf]
    %v215 = vld [vmem:[#allocation5 + $0xc] sm:$0xf]
    %v216 = vld [vmem:[#allocation5 + $0x10] sm:$0xf]
    %v217 = vld [vmem:[#allocation5 + $0x14] sm:$0xf]
    %v218 = vld [vmem:[#allocation5 + $0x18] sm:$0xf]
    %v219 = vld [vmem:[#allocation5 + $0x1c] sm:$0xf]
    %v220 = vld [vmem:[#allocation5 + $0x20] sm:$0xf]
    %v221 = vld [vmem:[#allocation5 + $0x24] sm:$0xf]
    %v222 = vld [vmem:[#allocation5 + $0x28] sm:$0xf]
    %v223 = vld [vmem:[#allocation5 + $0x2c] sm:$0xf]
    %v224 = vld [vmem:[#allocation5 + $0x30] sm:$0xf]
    %v225 = vld [vmem:[#allocation5 + $0x34] sm:$0xf]
    %v226 = vld [vmem:[#allocation5 + $0x38] sm:$0xf]
    %v227 = vld [vmem:[#allocation5 + $0x3c] sm:$0xf]
    %v228 = vld [vmem:[%s4] sm:$0x1]
    %v230 = vlaneseq
    %v231 = vshrl.u32 %v230, 7
    %v232 = vsub.s32 0, %v231
    %v233 = vrot.slane %v228, %v232
    %v251 = vunpack.c.l.b16 %v212
    %v252 = vunpack.c.l.b16 %v213
    %v253 = vunpack.c.l.b16 %v214
    %v254 = vunpack.c.l.b16 %v215
    %v255 = vunpack.c.l.b16 %v216
    %v256 = vunpack.c.l.b16 %v217
    %v257 = vunpack.c.l.b16 %v218
    %v258 = vunpack.c.l.b16 %v219
    %v259 = vunpack.c.l.b16 %v220
    %v260 = vunpack.c.l.b16 %v221
    %v261 = vunpack.c.l.b16 %v222
    %v262 = vunpack.c.l.b16 %v223
    %v263 = vunpack.c.l.b16 %v224
    %v264 = vunpack.c.l.b16 %v225
    %v265 = vunpack.c.l.b16 %v226
    %v266 = vunpack.c.l.b16 %v227
    %v267 = vpack.c.b16 %v252, %v251
    %v268 = vpack.c.b16 %v254, %v253
    %v269 = vpack.c.b16 %v256, %v255
    %v270 = vpack.c.b16 %v258, %v257
    %v271 = vpack.c.b16 %v260, %v259
    %v272 = vpack.c.b16 %v262, %v261
    %v273 = vpack.c.b16 %v264, %v263
    %v274 = vpack.c.b16 %v266, %v265
    %283 = vmatprep.subr.bf16.mxu0 0
    %284 = vmatpush1.bf16.msra.mxu0 %v274
    %285 = vmatprep.subr.bf16.mxu0 0
    %286 = vmatpush1.bf16.msra.mxu0 %v273
    %287 = vmatprep.subr.bf16.mxu0 0
    %288 = vmatpush1.bf16.msra.mxu0 %v272
    %289 = vmatprep.subr.bf16.mxu0 0
    %290 = vmatpush1.bf16.msra.mxu0 %v271
    %291 = vmatprep.subr.bf16.mxu0 0
    %292 = vmatpush1.bf16.msra.mxu0 %v270
    %293 = vmatprep.subr.bf16.mxu0 0
    %294 = vmatpush1.bf16.msra.mxu0 %v269
    %295 = vmatprep.subr.bf16.mxu0 0
    %296 = vmatpush1.bf16.msra.mxu0 %v268
    %297 = vmatprep.subr.bf16.mxu0 0
    %298 = vmatpush1.bf16.msra.mxu0 %v267
    %299 = vmatprep.subr.bf16.mxu0 0
    %300 = vmatpush2.bf16.msra.mxu0 0
    %301 = vmatprep.subr.bf16.mxu0 0
    %302 = vmatpush2.bf16.msra.mxu0 0
    %303 = vmatprep.subr.bf16.mxu0 0
    %304 = vmatpush2.bf16.msra.mxu0 0
    %305 = vmatprep.subr.bf16.mxu0 0
    %306 = vmatpush2.bf16.msra.mxu0 0
    %307 = vmatprep.subr.bf16.mxu0 0
    %308 = vmatpush2.bf16.msra.mxu0 0
    %309 = vmatprep.subr.bf16.mxu0 0
    %310 = vmatpush2.bf16.msra.mxu0 0
    %311 = vmatprep.subr.bf16.mxu0 0
    %312 = vmatpush2.bf16.msra.mxu0 0
    %313 = vmatprep.subr.bf16.mxu0 0
    %314 = vmatpush2.bf16.msra.mxu0 0
    %315 = vmatprep.mubr.bf16.mxu0 0
    %316 = vmatmul.mubr.bf16.gmra.mxu0 %v211
    %v317 = vpop.f32.mrf.mxu0
    %v318 = vadd.f32 %v233, %v317
    %v319 = vpop.f32.mrf.mxu0
    %v320 = vpop.f32.mrf.mxu0
    %v321 = vadd.f32 %v233, %v320
    %v322 = vpop.f32.mrf.mxu0
    %323 = vdwg.mxu0
    %v324 = vmax.f32 %v318, 0.0
    %v325 = vmax.f32 %v321, 0.0
    %v326 = vpack.c.bf16 %v325, %v324
    %v327 = vld [vmem:[#allocation7] sm:$0xf]
    %v328 = vld [vmem:[#allocation7 + $0x4] sm:$0xf]
    %v329 = vld [vmem:[#allocation7 + $0x8] sm:$0xf]
    %v330 = vld [vmem:[#allocation7 + $0xc] sm:$0xf]
    %v331 = vld [vmem:[#allocation7 + $0x10] sm:$0xf]
    %v332 = vld [vmem:[#allocation7 + $0x14] sm:$0xf]
    %v333 = vld [vmem:[#allocation7 + $0x18] sm:$0xf]
    %v334 = vld [vmem:[#allocation7 + $0x1c] sm:$0xf]
    %v335 = vld [vmem:[#allocation7 + $0x20] sm:$0xf]
    %v336 = vld [vmem:[#allocation7 + $0x24] sm:$0xf]
    %v337 = vld [vmem:[#allocation7 + $0x28] sm:$0xf]
    %v338 = vld [vmem:[#allocation7 + $0x2c] sm:$0xf]
    %v339 = vld [vmem:[#allocation7 + $0x30] sm:$0xf]
    %v340 = vld [vmem:[#allocation7 + $0x34] sm:$0xf]
    %v341 = vld [vmem:[#allocation7 + $0x38] sm:$0xf]
    %v342 = vld [vmem:[#allocation7 + $0x3c] sm:$0xf]
    %v343 = vld [vmem:[%s6] sm:$0x1]
    %v345 = vlaneseq
    %v346 = vshrl.u32 %v345, 7
    %v347 = vsub.s32 0, %v346
    %v348 = vrot.slane %v343, %v347
    %v366 = vunpack.c.l.b16 %v327
    %v367 = vunpack.c.l.b16 %v328
    %v368 = vunpack.c.l.b16 %v329
    %v369 = vunpack.c.l.b16 %v330
    %v370 = vunpack.c.l.b16 %v331
    %v371 = vunpack.c.l.b16 %v332
    %v372 = vunpack.c.l.b16 %v333
    %v373 = vunpack.c.l.b16 %v334
    %v374 = vunpack.c.l.b16 %v335
    %v375 = vunpack.c.l.b16 %v336
    %v376 = vunpack.c.l.b16 %v337
    %v377 = vunpack.c.l.b16 %v338
    %v378 = vunpack.c.l.b16 %v339
    %v379 = vunpack.c.l.b16 %v340
    %v380 = vunpack.c.l.b16 %v341
    %v381 = vunpack.c.l.b16 %v342
    %v382 = vpack.c.b16 %v367, %v366
    %v383 = vpack.c.b16 %v369, %v368
    %v384 = vpack.c.b16 %v371, %v370
    %v385 = vpack.c.b16 %v373, %v372
    %v386 = vpack.c.b16 %v375, %v374
    %v387 = vpack.c.b16 %v377, %v376
    %v388 = vpack.c.b16 %v379, %v378
    %v389 = vpack.c.b16 %v381, %v380
    %398 = vmatprep.subr.bf16.mxu0 0
    %399 = vmatpush1.bf16.msra.mxu0 %v389
    %400 = vmatprep.subr.bf16.mxu0 0
    %401 = vmatpush1.bf16.msra.mxu0 %v388
    %402 = vmatprep.subr.bf16.mxu0 0
    %403 = vmatpush1.bf16.msra.mxu0 %v387
    %404 = vmatprep.subr.bf16.mxu0 0
    %405 = vmatpush1.bf16.msra.mxu0 %v386
    %406 = vmatprep.subr.bf16.mxu0 0
    %407 = vmatpush1.bf16.msra.mxu0 %v385
    %408 = vmatprep.subr.bf16.mxu0 0
    %409 = vmatpush1.bf16.msra.mxu0 %v384
    %410 = vmatprep.subr.bf16.mxu0 0
    %411 = vmatpush1.bf16.msra.mxu0 %v383
    %412 = vmatprep.subr.bf16.mxu0 0
    %413 = vmatpush1.bf16.msra.mxu0 %v382
    %414 = vmatprep.subr.bf16.mxu0 0
    %415 = vmatpush2.bf16.msra.mxu0 0
    %416 = vmatprep.subr.bf16.mxu0 0
    %417 = vmatpush2.bf16.msra.mxu0 0
    %418 = vmatprep.subr.bf16.mxu0 0
    %419 = vmatpush2.bf16.msra.mxu0 0
    %420 = vmatprep.subr.bf16.mxu0 0
    %421 = vmatpush2.bf16.msra.mxu0 0
    %422 = vmatprep.subr.bf16.mxu0 0
    %423 = vmatpush2.bf16.msra.mxu0 0
    %424 = vmatprep.subr.bf16.mxu0 0
    %425 = vmatpush2.bf16.msra.mxu0 0
    %426 = vmatprep.subr.bf16.mxu0 0
    %427 = vmatpush2.bf16.msra.mxu0 0
    %428 = vmatprep.subr.bf16.mxu0 0
    %429 = vmatpush2.bf16.msra.mxu0 0
    %430 = vmatprep.mubr.bf16.mxu0 0
    %431 = vmatmul.mubr.bf16.gmra.mxu0 %v326
    %v432 = vpop.f32.mrf.mxu0
    %v433 = vadd.f32 %v348, %v432
    %v434 = vpop.f32.mrf.mxu0
    %v435 = vpop.f32.mrf.mxu0
    %v436 = vadd.f32 %v348, %v435
    %v437 = vpop.f32.mrf.mxu0
    %438 = vdwg.mxu0
    %v439 = vmax.f32 %v433, 0.0
    %v440 = vmax.f32 %v436, 0.0
    %v441 = vpack.c.bf16 %v440, %v439
    %v442 = vld [vmem:[#allocation8] sm:$0xf]
    %v443 = vld [vmem:[#allocation8 + $0x4] sm:$0xf]
    %v444 = vld [vmem:[#allocation8 + $0x8] sm:$0xf]
    %v445 = vld [vmem:[#allocation8 + $0xc] sm:$0xf]
    %v446 = vld [vmem:[#allocation8 + $0x10] sm:$0xf]
    %v447 = vld [vmem:[#allocation8 + $0x14] sm:$0xf]
    %v448 = vld [vmem:[#allocation8 + $0x18] sm:$0xf]
    %v449 = vld [vmem:[#allocation8 + $0x1c] sm:$0xf]
    %v450 = vld [vmem:[#allocation8 + $0x20] sm:$0xf]
    %v451 = vld [vmem:[#allocation8 + $0x24] sm:$0xf]
    %v452 = vld [vmem:[#allocation8 + $0x28] sm:$0xf]
    %v453 = vld [vmem:[#allocation8 + $0x2c] sm:$0xf]
    %v454 = vld [vmem:[#allocation8 + $0x30] sm:$0xf]
    %v455 = vld [vmem:[#allocation8 + $0x34] sm:$0xf]
    %v456 = vld [vmem:[#allocation8 + $0x38] sm:$0xf]
    %v457 = vld [vmem:[#allocation8 + $0x3c] sm:$0xf]
    %v458 = vld [vmem:[%s8] sm:$0x1]
    %v460 = vlaneseq
    %v461 = vshrl.u32 %v460, 7
    %v462 = vsub.s32 0, %v461
    %v463 = vrot.slane %v458, %v462
    %v481 = vunpack.c.l.b16 %v442
    %v482 = vunpack.c.l.b16 %v443
    %v483 = vunpack.c.l.b16 %v444
    %v484 = vunpack.c.l.b16 %v445
    %v485 = vunpack.c.l.b16 %v446
    %v486 = vunpack.c.l.b16 %v447
    %v487 = vunpack.c.l.b16 %v448
    %v488 = vunpack.c.l.b16 %v449
    %v489 = vunpack.c.l.b16 %v450
    %v490 = vunpack.c.l.b16 %v451
    %v491 = vunpack.c.l.b16 %v452
    %v492 = vunpack.c.l.b16 %v453
    %v493 = vunpack.c.l.b16 %v454
    %v494 = vunpack.c.l.b16 %v455
    %v495 = vunpack.c.l.b16 %v456
    %v496 = vunpack.c.l.b16 %v457
    %v497 = vpack.c.b16 %v482, %v481
    %v498 = vpack.c.b16 %v484, %v483
    %v499 = vpack.c.b16 %v486, %v485
    %v500 = vpack.c.b16 %v488, %v487
    %v501 = vpack.c.b16 %v490, %v489
    %v502 = vpack.c.b16 %v492, %v491
    %v503 = vpack.c.b16 %v494, %v493
    %v504 = vpack.c.b16 %v496, %v495
    %513 = vmatprep.subr.bf16.mxu0 0
    %514 = vmatpush1.bf16.msra.mxu0 %v504
    %515 = vmatprep.subr.bf16.mxu0 0
    %516 = vmatpush1.bf16.msra.mxu0 %v503
    %517 = vmatprep.subr.bf16.mxu0 0
    %518 = vmatpush1.bf16.msra.mxu0 %v502
    %519 = vmatprep.subr.bf16.mxu0 0
    %520 = vmatpush1.bf16.msra.mxu0 %v501
    %521 = vmatprep.subr.bf16.mxu0 0
    %522 = vmatpush1.bf16.msra.mxu0 %v500
    %523 = vmatprep.subr.bf16.mxu0 0
    %524 = vmatpush1.bf16.msra.mxu0 %v499
    %525 = vmatprep.subr.bf16.mxu0 0
    %526 = vmatpush1.bf16.msra.mxu0 %v498
    %527 = vmatprep.subr.bf16.mxu0 0
    %528 = vmatpush1.bf16.msra.mxu0 %v497
    %529 = vmatprep.subr.bf16.mxu0 0
    %530 = vmatpush2.bf16.msra.mxu0 0
    %531 = vmatprep.subr.bf16.mxu0 0
    %532 = vmatpush2.bf16.msra.mxu0 0
    %533 = vmatprep.subr.bf16.mxu0 0
    %534 = vmatpush2.bf16.msra.mxu0 0
    %535 = vmatprep.subr.bf16.mxu0 0
    %536 = vmatpush2.bf16.msra.mxu0 0
    %537 = vmatprep.subr.bf16.mxu0 0
    %538 = vmatpush2.bf16.msra.mxu0 0
    %539 = vmatprep.subr.bf16.mxu0 0
    %540 = vmatpush2.bf16.msra.mxu0 0
    %541 = vmatprep.subr.bf16.mxu0 0
    %542 = vmatpush2.bf16.msra.mxu0 0
    %543 = vmatprep.subr.bf16.mxu0 0
    %544 = vmatpush2.bf16.msra.mxu0 0
    %545 = vmatprep.mubr.bf16.mxu0 0
    %546 = vmatmul.mubr.bf16.gmra.mxu0 %v441
    %v547 = vpop.f32.mrf.mxu0
    %v548 = vadd.f32 %v463, %v547
    %v549 = vpop.f32.mrf.mxu0
    %v550 = vpop.f32.mrf.mxu0
    %v551 = vadd.f32 %v463, %v550
    %v552 = vpop.f32.mrf.mxu0
    %553 = vdwg.mxu0
    %554 = vst [vmem:[#allocation10] sm:$0xff] %v548
    %555 = vst [vmem:[#allocation10 + $0x8] sm:$0xff] %v551
    // Predicated region
    $region54: #{forward.1} parent=1 // pred_check
      _
    $region55: #{forward.1} parent=1 // pred_check_branch
      %557 = sbr.rel (0) target = $region57
    $region56: #{forward.1} parent=1 // pred_region
      %s559 = ssub.s32 256, 256
      %560 = vsyncadd [#allocation4], %s559
      %s561 = sshll.u32 [#allocation10], 4
      %s562 = int_to_ptr.vmem [resolvable:$true] %s561
      %567 = dma.vmem_to_hbm [thread:$0]  %s562, 256, %s9, [#allocation4], 128, 128, 8
    $region57: #{forward.1} parent=1 // pred_fallthru
      _
    // Predicated region
    $region58: #{forward.1} parent=1 // pred_check
      _
    $region59: #{forward.1} parent=1 // pred_check_branch
      %569 = sbr.rel (0) target = $region61
    $region60: #{forward.1} parent=1 // pred_region
      %570 = dma.done [#allocation4], 256
    $region61: #{forward.1} parent=1 // pred_fallthru
      _
    %571 = vsyncpa [#allocation3], 1
    %572 = vsyncpa [#allocation6], 1
    %573 = vsyncpa [#allocation9], 1
    %574 = vsyncpa [#allocation4], 1

</llo_original>
